<compile_context>
chip_gen: v7x
topology: tpu7x:2x2x1
jax: 0.10.0
libtpu: 0.0.40
codegen_flags: <defaults>
</compile_context>

<pallas_src>
import functools

import jax
import jax.numpy as jnp
from jax.experimental import pallas as pl
from jax.experimental.pallas import tpu as pltpu


def _pad_up(n, m):
    return ((n + m - 1) // m) * m


def _blk_bytes(rows, cols, itemsize, bufs=2):
    """VMEM bytes of a (rows, cols) block: sublanes pad to 8, lanes to 128."""
    return _pad_up(max(rows, 1), 8) * _pad_up(max(cols, 1), 128) * itemsize * bufs


def _weight_bytes(d_model, tf):
    return (_blk_bytes(d_model, tf, 2)           # W1 chunk, bf16, double-buffered
            + _blk_bytes(tf, d_model, 2)         # W2 chunk, bf16
            + _blk_bytes(1, tf, 4)               # b1 chunk
            + 3 * _blk_bytes(1, d_model, 4))     # b2 / gamma / beta


def _token_bytes(tm, d_model, tf, out_itemsize):
    return (_blk_bytes(tm, d_model, 4)                    # x tile (2 bufs)
            + _blk_bytes(tm, d_model, out_itemsize)       # out tile (2 bufs)
            + _blk_bytes(tm, d_model, 4, bufs=1)          # f32 accumulator scratch
            + _blk_bytes(tm, d_model, 2, bufs=1)          # cached bf16 x scratch
            + _blk_bytes(tm, tf, 4, bufs=1))              # live relu(xW1+b1) intermediate


def _ffn_kernel(x_ref, w1_ref, b1_ref, w2_ref, b2_ref, gamma_ref, beta_ref,
                o_ref, acc_ref, xbf_ref, *, d_model, eps):
    k = pl.program_id(1)
    n_k = pl.num_programs(1)

    @pl.when(k == 0)
    def _():
        # cache the bf16 cast of x once per token tile; fold residual + b2
        # into the accumulator init so the epilogue is just LayerNorm.
        xbf_ref[...] = x_ref[...].astype(jnp.bfloat16)
        acc_ref[...] = x_ref[...].astype(jnp.float32) + b2_ref[...]

    # conv1 chunk (kernel_size=1): relu(x @ W1[:, chunk] + b1[chunk])
    h = jnp.dot(xbf_ref[...], w1_ref[...], preferred_element_type=jnp.float32)
    h = jnp.maximum(h + b1_ref[...], 0.0)                        # (tm, tf) f32

    # conv2 chunk, accumulated in f32 (acc already carries residual + b2)
    acc_ref[...] += jnp.dot(h.astype(jnp.bfloat16), w2_ref[...],
                            preferred_element_type=jnp.float32)  # (tm, d_model)

    @pl.when(k == n_k - 1)
    def _():
        # LayerNorm on z = x + FFN(x): two-pass mean / unbiased variance
        # (torch std, ddof=1), exact divide by (std + eps).
        z = acc_ref[...]
        mean = jnp.mean(z, axis=-1, keepdims=True)
        diff = z - mean
        var = jnp.sum(diff * diff, axis=-1, keepdims=True) * (1.0 / (d_model - 1))
        std = jnp.sqrt(var)
        ln = diff * (1.0 / (std + eps))
        o_ref[...] = (gamma_ref[...] * ln + beta_ref[...]).astype(o_ref.dtype)


def poswise_ffn(x, w1, b1, w2, b2, gamma, beta, *, eps=1e-6, tm=None, tf=None):
    """out = LayerNorm(x + relu(x @ w1 + b1) @ w2 + b2).  x: (B, S, d_model)."""
    B, S, d_model = x.shape
    d_ff = w1.shape[1]
    M = B * S
    out_dtype = x.dtype
    out_itemsize = jnp.dtype(out_dtype).itemsize

    # Per-chip VMEM capacity (v5e/v6e: 128 MiB, v7x: 64 MiB per TC), 20% headroom.
    try:
        vmem_cap = int(pltpu.get_tpu_info().vmem_capacity_bytes)
    except Exception:
        vmem_cap = 64 << 20
    budget = int(vmem_cap * 0.8)

    # --- d_ff chunking: keep full bf16 weights resident whenever they fit ---
    if tf is None:
        if _weight_bytes(d_model, d_ff) <= budget // 2:
            tf = d_ff                                # n_k == 1, weights fetched once
        else:
            tf = min(512, _pad_up(d_ff, 128))        # 128-multiple chunk (pad d_ff)
            for cand in (512, 384, 256, 128):        # prefer a clean divisor
                if cand <= d_ff and d_ff % cand == 0:
                    tf = cand
                    break
    d_ff_pad = _pad_up(d_ff, tf)
    fixed_bytes = _weight_bytes(d_model, tf)

    # --- token tile: biggest that fits the budget, generation-aware cap ---
    if tm is None:
        tm_cap = 1024 if vmem_cap > (96 << 20) else 384   # v5e/v6e vs v7x
        tm_cap = min(tm_cap, _pad_up((M + 1) // 2, 8))    # >= 2 token tiles (dual-TC)
        per_row = _token_bytes(8, d_model, tf, out_itemsize) // 8
        avail = max(budget - fixed_bytes, 8 * per_row)
        tm_fit = max(8, (avail // per_row) // 8 * 8)
        tm = max(8, min(tm_cap, tm_fit))
        if tm >= 256:
            tm = (tm // 256) * 256                        # MXU-friendly multiple
    else:
        tm = max(8, _pad_up(tm, 8))

    # Pad tokens to a tile multiple (pad rows are sliced off afterwards).
    M_pad = _pad_up(M, tm)
    x2 = x.reshape(M, d_model).astype(jnp.float32)
    if M_pad != M:
        x2 = jnp.pad(x2, ((0, M_pad - M), (0, 0)))

    # Zero-pad d_ff if the chunk size doesn't divide it (exact: padded W1 cols,
    # b1 entries and W2 rows are zero, so they contribute nothing).
    w1_p, b1_p, w2_p = w1, b1, w2
    if d_ff_pad != d_ff:
        w1_p = jnp.pad(w1, ((0, 0), (0, d_ff_pad - d_ff)))
        b1_p = jnp.pad(b1, ((0, d_ff_pad - d_ff),))
        w2_p = jnp.pad(w2, ((0, d_ff_pad - d_ff), (0, 0)))

    # bf16 weights -> half the weight DMA bytes / VMEM residency; f32 biases/LN.
    w1_bf = w1_p.astype(jnp.bfloat16)
    w2_bf = w2_p.astype(jnp.bfloat16)
    b1_2 = b1_p.reshape(1, d_ff_pad).astype(jnp.float32)
    b2_2 = b2.reshape(1, d_model).astype(jnp.float32)
    gamma_2 = gamma.reshape(1, d_model).astype(jnp.float32)
    beta_2 = beta.reshape(1, d_model).astype(jnp.float32)

    n_i = M_pad // tm
    n_k = d_ff_pad // tf

    footprint = fixed_bytes + _token_bytes(tm, d_model, tf, out_itemsize)
    vmem_limit = int(min(int(0.9 * vmem_cap),
                         max(32 << 20, int(footprint * 1.25))))

    kernel = functools.partial(_ffn_kernel, d_model=d_model, eps=eps)

    out2 = pl.pallas_call(
        kernel,
        out_shape=jax.ShapeDtypeStruct((M_pad, d_model), out_dtype),
        grid_spec=pltpu.PrefetchScalarGridSpec(
            num_scalar_prefetch=0,
            grid=(n_i, n_k),                                    # reduction axis last
            in_specs=[
                pl.BlockSpec((tm, d_model), lambda i, k: (i, 0)),   # x tile
                pl.BlockSpec((d_model, tf), lambda i, k: (0, k)),   # W1 chunk
                pl.BlockSpec((1, tf), lambda i, k: (0, k)),         # b1 chunk
                pl.BlockSpec((tf, d_model), lambda i, k: (k, 0)),   # W2 chunk
                pl.BlockSpec((1, d_model), lambda i, k: (0, 0)),    # b2
                pl.BlockSpec((1, d_model), lambda i, k: (0, 0)),    # gamma
                pl.BlockSpec((1, d_model), lambda i, k: (0, 0)),    # beta
            ],
            out_specs=pl.BlockSpec((tm, d_model), lambda i, k: (i, 0)),
            scratch_shapes=[pltpu.VMEM((tm, d_model), jnp.float32),     # f32 acc
                            pltpu.VMEM((tm, d_model), jnp.bfloat16)],   # cached bf16 x
        ),
        compiler_params=pltpu.CompilerParams(
            dimension_semantics=("parallel", "arbitrary"),
            vmem_limit_bytes=vmem_limit),
    )(x2, w1_bf, b1_2, w2_bf, b2_2, gamma_2, beta_2)

    if M_pad != M:
        out2 = out2[:M]
    return out2.reshape(B, S, d_model)


def _reference(x, w1, b1, w2, b2, gamma, beta, eps=1e-6):
    # pure-JAX f32 reference mirroring the PyTorch forward exactly
    h = jax.nn.relu(jnp.einsum("bsd,df->bsf", x, w1) + b1)
    y = jnp.einsum("bsf,fd->bsd", h, w2) + b2
    z = x + y
    mean = z.mean(axis=-1, keepdims=True)
    std = jnp.sqrt(((z - mean) ** 2).sum(axis=-1, keepdims=True) / (z.shape[-1] - 1))
    return gamma * ((z - mean) / (std + eps)) + beta


if __name__ == "__main__":
    # small shapes implied by the forward: (batch, seq_len, d_model)
    B, S, d_model, d_ff = 2, 8, 32, 64

    key = jax.random.PRNGKey(0)
    kx, k1, kb1, k2, kb2 = jax.random.split(key, 5)

    x = jax.random.normal(kx, (B, S, d_model), dtype=jnp.float32)

    # Conv1d(kernel_size=1) weights: torch weight (out_ch, in_ch, 1) -> stored
    # transposed here as (in_ch, out_ch) for a plain matmul.
    w1 = jax.random.normal(k1, (d_model, d_ff), dtype=jnp.float32) * 0.1
    b1 = jax.random.normal(kb1, (d_ff,), dtype=jnp.float32) * 0.1
    w2 = jax.random.normal(k2, (d_ff, d_model), dtype=jnp.float32) * 0.1
    b2 = jax.random.normal(kb2, (d_model,), dtype=jnp.float32) * 0.1

    # LayerNormalization params: gamma=ones, beta=zeros (as in __init__)
    gamma = jnp.ones((d_model,), dtype=jnp.float32)
    beta = jnp.zeros((d_model,), dtype=jnp.float32)

    out = poswise_ffn(x, w1, b1, w2, b2, gamma, beta)
    out = jax.block_until_ready(out)

    ref = _reference(x, w1, b1, w2, b2, gamma, beta)
    assert out.shape == (B, S, d_model)
    # bf16 MXU operands -> looser tolerance vs f32 reference.
    assert jnp.allclose(out, ref, atol=3e-2, rtol=3e-2), "mismatch vs reference"

    print("KERNEL_OK")
</pallas_src>

<mosaic_0001>
module attributes {stable_mosaic.version = 11 : i64} {
  func.func @_ffn_kernel(%arg0: i32, %arg1: i32, %arg2: memref<8x32xf32, #tpu.memory_space<vmem>>, %arg3: memref<32x64xbf16, #tpu.memory_space<vmem>>, %arg4: memref<1x64xf32, #tpu.memory_space<vmem>>, %arg5: memref<64x32xbf16, #tpu.memory_space<vmem>>, %arg6: memref<1x32xf32, #tpu.memory_space<vmem>>, %arg7: memref<1x32xf32, #tpu.memory_space<vmem>>, %arg8: memref<1x32xf32, #tpu.memory_space<vmem>>, %arg9: memref<8x32xf32, #tpu.memory_space<vmem>>, %arg10: memref<8x32xf32, #tpu.memory_space<vmem>>, %arg11: memref<8x32xbf16, #tpu.memory_space<vmem>>) attributes {dimension_semantics = [#tpu.dimension_semantics<parallel>, #tpu.dimension_semantics<arbitrary>], iteration_bounds = array<i64: 2, 1>, scalar_prefetch = 0 : i64, scratch_operands = 2 : i64, tpu.core_type = #tpu.core_type<tc>, window_params = [{transform_indices = @transform_0, window_bounds = array<i64: 8, 32>}, {transform_indices = @transform_1, window_bounds = array<i64: 32, 64>}, {transform_indices = @transform_2, window_bounds = array<i64: 1, 64>}, {transform_indices = @transform_3, window_bounds = array<i64: 64, 32>}, {pipeline_mode = #tpu.pipeline_mode<synchronous>, transform_indices = @transform_4, window_bounds = array<i64: 1, 32>}, {pipeline_mode = #tpu.pipeline_mode<synchronous>, transform_indices = @transform_5, window_bounds = array<i64: 1, 32>}, {pipeline_mode = #tpu.pipeline_mode<synchronous>, transform_indices = @transform_6, window_bounds = array<i64: 1, 32>}, {transform_indices = @transform_7, window_bounds = array<i64: 8, 32>}]} {
    %c0_i32 = arith.constant 0 : i32
    %0 = arith.cmpi eq, %arg1, %c0_i32 : i32
    %1 = arith.extui %0 : i1 to i32
    %c0_i32_0 = arith.constant 0 : i32
    %2 = arith.cmpi ne, %1, %c0_i32_0 : i32
    scf.if %2 {
      %c0_16 = arith.constant 0 : index
      %c0_17 = arith.constant 0 : index
      %20 = vector.load %arg2[%c0_16, %c0_17] : memref<8x32xf32, #tpu.memory_space<vmem>>, vector<8x32xf32>
      %21 = arith.truncf %20 : vector<8x32xf32> to vector<8x32xbf16>
      %c0_18 = arith.constant 0 : index
      %c0_19 = arith.constant 0 : index
      %22 = vector.load %arg11[%c0_18, %c0_19] : memref<8x32xbf16, #tpu.memory_space<vmem>>, vector<8x32xbf16>
      tpu.vector_store %arg11[%c0_18, %c0_19], %21 {strides = array<i32>} : memref<8x32xbf16, #tpu.memory_space<vmem>>, vector<8x32xbf16>,
      %c0_20 = arith.constant 0 : index
      %c0_21 = arith.constant 0 : index
      %23 = vector.load %arg2[%c0_20, %c0_21] : memref<8x32xf32, #tpu.memory_space<vmem>>, vector<8x32xf32>
      %c0_22 = arith.constant 0 : index
      %c0_23 = arith.constant 0 : index
      %24 = vector.load %arg6[%c0_22, %c0_23] : memref<1x32xf32, #tpu.memory_space<vmem>>, vector<1x32xf32>
      %25 = vector.broadcast %24 : vector<1x32xf32> to vector<8x32xf32>
      %26 = arith.addf %23, %25 : vector<8x32xf32>
      %c0_24 = arith.constant 0 : index
      %c0_25 = arith.constant 0 : index
      %27 = vector.load %arg10[%c0_24, %c0_25] : memref<8x32xf32, #tpu.memory_space<vmem>>, vector<8x32xf32>
      tpu.vector_store %arg10[%c0_24, %c0_25], %26 {strides = array<i32>} : memref<8x32xf32, #tpu.memory_space<vmem>>, vector<8x32xf32>,
    } else {
    }
    %c0 = arith.constant 0 : index
    %c0_1 = arith.constant 0 : index
    %3 = vector.load %arg11[%c0, %c0_1] : memref<8x32xbf16, #tpu.memory_space<vmem>>, vector<8x32xbf16>
    %c0_2 = arith.constant 0 : index
    %c0_3 = arith.constant 0 : index
    %4 = vector.load %arg3[%c0_2, %c0_3] : memref<32x64xbf16, #tpu.memory_space<vmem>>, vector<32x64xbf16>
    %cst = arith.constant dense<0.000000e+00> : vector<8x64xf32>
    %5 = tpu.matmul %3, %4, %cst {dimension_numbers = #tpu.dot_dimension_numbers<[1], [0], [0], [1], [0, 0, 1, 1], [], []>} : vector<8x32xbf16>, vector<32x64xbf16>, vector<8x64xf32> -> vector<8x64xf32>
    %c0_4 = arith.constant 0 : index
    %c0_5 = arith.constant 0 : index
    %6 = vector.load %arg4[%c0_4, %c0_5] : memref<1x64xf32, #tpu.memory_space<vmem>>, vector<1x64xf32>
    %7 = vector.broadcast %6 : vector<1x64xf32> to vector<8x64xf32>
    %8 = arith.addf %5, %7 : vector<8x64xf32>
    %cst_6 = arith.constant 0.000000e+00 : f32
    %9 = vector.broadcast %cst_6 : f32 to vector<8x64xf32>
    %10 = arith.maximumf %8, %9 : vector<8x64xf32>
    %c0_7 = arith.constant 0 : index
    %c0_8 = arith.constant 0 : index
    %11 = vector.load %arg10[%c0_7, %c0_8] : memref<8x32xf32, #tpu.memory_space<vmem>>, vector<8x32xf32>
    %12 = arith.truncf %10 : vector<8x64xf32> to vector<8x64xbf16>
    %c0_9 = arith.constant 0 : index
    %c0_10 = arith.constant 0 : index
    %13 = vector.load %arg5[%c0_9, %c0_10] : memref<64x32xbf16, #tpu.memory_space<vmem>>, vector<64x32xbf16>
    %cst_11 = arith.constant dense<0.000000e+00> : vector<8x32xf32>
    %14 = tpu.matmul %12, %13, %cst_11 {dimension_numbers = #tpu.dot_dimension_numbers<[1], [0], [0], [1], [0, 0, 1, 1], [], []>} : vector<8x64xbf16>, vector<64x32xbf16>, vector<8x32xf32> -> vector<8x32xf32>
    %15 = arith.addf %11, %14 : vector<8x32xf32>
    %c0_12 = arith.constant 0 : index
    %c0_13 = arith.constant 0 : index
    %16 = vector.load %arg10[%c0_12, %c0_13] : memref<8x32xf32, #tpu.memory_space<vmem>>, vector<8x32xf32>
    tpu.vector_store %arg10[%c0_12, %c0_13], %15 {strides = array<i32>} : memref<8x32xf32, #tpu.memory_space<vmem>>, vector<8x32xf32>,
    %c0_i32_14 = arith.constant 0 : i32
    %17 = arith.cmpi eq, %arg1, %c0_i32_14 : i32
    %18 = arith.extui %17 : i1 to i32
    %c0_i32_15 = arith.constant 0 : i32
    %19 = arith.cmpi ne, %18, %c0_i32_15 : i32
    scf.if %19 {
      %c0_16 = arith.constant 0 : index
      %c0_17 = arith.constant 0 : index
      %20 = vector.load %arg10[%c0_16, %c0_17] : memref<8x32xf32, #tpu.memory_space<vmem>>, vector<8x32xf32>
      %cst_18 = arith.constant dense<0.000000e+00> : vector<8xf32>
      %21 = vector.multi_reduction <add>, %20, %cst_18 [1] : vector<8x32xf32> to vector<8xf32>
      %22 = vector.shape_cast %21 : vector<8xf32> to vector<8x1xf32>
      %cst_19 = arith.constant 3.200000e+01 : f32
      %23 = vector.broadcast %cst_19 : f32 to vector<8x1xf32>
      %24 = arith.divf %22, %23 : vector<8x1xf32>
      %25 = vector.broadcast %24 : vector<8x1xf32> to vector<8x32xf32>
      %26 = arith.subf %20, %25 : vector<8x32xf32>
      %27 = arith.mulf %26, %26 : vector<8x32xf32>
      %cst_20 = arith.constant dense<0.000000e+00> : vector<8xf32>
      %28 = vector.multi_reduction <add>, %27, %cst_20 [1] : vector<8x32xf32> to vector<8xf32>
      %29 = vector.shape_cast %28 : vector<8xf32> to vector<8x1xf32>
      %cst_21 = arith.constant 0.0322580636 : f32
      %30 = vector.broadcast %cst_21 : f32 to vector<8x1xf32>
      %31 = arith.mulf %29, %30 : vector<8x1xf32>
      %32 = math.sqrt %31 : vector<8x1xf32>
      %cst_22 = arith.constant 9.99999997E-7 : f32
      %33 = vector.broadcast %cst_22 : f32 to vector<8x1xf32>
      %34 = arith.addf %32, %33 : vector<8x1xf32>
      %cst_23 = arith.constant 1.000000e+00 : f32
      %35 = vector.broadcast %cst_23 : f32 to vector<8x1xf32>
      %36 = arith.divf %35, %34 : vector<8x1xf32>
      %37 = vector.broadcast %36 : vector<8x1xf32> to vector<8x32xf32>
      %38 = arith.mulf %26, %37 : vector<8x32xf32>
      %c0_24 = arith.constant 0 : index
      %c0_25 = arith.constant 0 : index
      %39 = vector.load %arg7[%c0_24, %c0_25] : memref<1x32xf32, #tpu.memory_space<vmem>>, vector<1x32xf32>
      %40 = vector.broadcast %39 : vector<1x32xf32> to vector<8x32xf32>
      %41 = arith.mulf %40, %38 : vector<8x32xf32>
      %c0_26 = arith.constant 0 : index
      %c0_27 = arith.constant 0 : index
      %42 = vector.load %arg8[%c0_26, %c0_27] : memref<1x32xf32, #tpu.memory_space<vmem>>, vector<1x32xf32>
      %43 = vector.broadcast %42 : vector<1x32xf32> to vector<8x32xf32>
      %44 = arith.addf %41, %43 : vector<8x32xf32>
      %c0_28 = arith.constant 0 : index
      %c0_29 = arith.constant 0 : index
      %45 = vector.load %arg9[%c0_28, %c0_29] : memref<8x32xf32, #tpu.memory_space<vmem>>, vector<8x32xf32>
      tpu.vector_store %arg9[%c0_28, %c0_29], %44 {strides = array<i32>} : memref<8x32xf32, #tpu.memory_space<vmem>>, vector<8x32xf32>,
    } else {
    }
    return
  }
  func.func @transform_0(%arg0: i32, %arg1: i32) -> (i32, i32) {
    %c0_i32 = arith.constant 0 : i32
    %c0_i32_0 = arith.constant 0 : i32
    return %arg0, %c0_i32 : i32, i32
  }
  func.func @transform_1(%arg0: i32, %arg1: i32) -> (i32, i32) {
    %c0_i32 = arith.constant 0 : i32
    %c0_i32_0 = arith.constant 0 : i32
    return %c0_i32, %arg1 : i32, i32
  }
  func.func @transform_2(%arg0: i32, %arg1: i32) -> (i32, i32) {
    %c0_i32 = arith.constant 0 : i32
    %c0_i32_0 = arith.constant 0 : i32
    return %c0_i32, %arg1 : i32, i32
  }
  func.func @transform_3(%arg0: i32, %arg1: i32) -> (i32, i32) {
    %c0_i32 = arith.constant 0 : i32
    %c0_i32_0 = arith.constant 0 : i32
    return %arg1, %c0_i32 : i32, i32
  }
  func.func @transform_4(%arg0: i32, %arg1: i32) -> (i32, i32) {
    %c0_i32 = arith.constant 0 : i32
    %c0_i32_0 = arith.constant 0 : i32
    %c0_i32_1 = arith.constant 0 : i32
    return %c0_i32, %c0_i32_0 : i32, i32
  }
  func.func @transform_5(%arg0: i32, %arg1: i32) -> (i32, i32) {
    %c0_i32 = arith.constant 0 : i32
    %c0_i32_0 = arith.constant 0 : i32
    %c0_i32_1 = arith.constant 0 : i32
    return %c0_i32, %c0_i32_0 : i32, i32
  }
  func.func @transform_6(%arg0: i32, %arg1: i32) -> (i32, i32) {
    %c0_i32 = arith.constant 0 : i32
    %c0_i32_0 = arith.constant 0 : i32
    %c0_i32_1 = arith.constant 0 : i32
    return %c0_i32, %c0_i32_0 : i32, i32
  }
  func.func @transform_7(%arg0: i32, %arg1: i32) -> (i32, i32) {
    %c0_i32 = arith.constant 0 : i32
    %c0_i32_0 = arith.constant 0 : i32
    return %arg0, %c0_i32 : i32, i32
  }
}

</mosaic_0001>

<llo_original>
// kernel: tpu_custom_call.1
$region0: #{tpu_custom_call.1}
  #allocation0 [shape = 'u32[]', space=smem, size = 0x4, offset = 0x4, fixed_abs, tag = 'smem constant byte address 0x4 - core index']
  #allocation1 [shape = 'u32[144,128]{1,0:T(1,128)}', space=vmem, size = 0x12000, scoped, tag = 'internal scratch']
  #allocation2 [shape = 'f32[8,32]{1,0:T(8,128)}', space=vmem, size = 0x1000, scoped, tag = 'scratch operand']
  #allocation3 [shape = 'bf16[8,32]{1,0:T(8,128)(2,1)}', space=vmem, size = 0x800, scoped, tag = 'scratch operand']
  %s0 = inlined_call_operand.vmem [shape: f32[16,32], index: 0, kind: input, shape index: {}]
  %s1 = inlined_call_operand.vmem [shape: bf16[32,64], index: 1, kind: input, shape index: {}]
  %s2 = inlined_call_operand.vmem [shape: f32[1,64], index: 2, kind: input, shape index: {}]
  %s3 = inlined_call_operand.vmem [shape: bf16[64,32], index: 3, kind: input, shape index: {}]
  %s4 = inlined_call_operand.vmem [shape: f32[1,32], index: 4, kind: input, shape index: {}]
  %s5 = inlined_call_operand.vmem [shape: f32[1,32], index: 5, kind: input, shape index: {}]
  %s6 = inlined_call_operand.vmem [shape: f32[1,32], index: 6, kind: input, shape index: {}]
  %s7 = inlined_call_operand.hbm [shape: f32[16,32], index: 7, kind: output, shape index: {}]
  %s8 = sld [smem:[#allocation0]]
  $region69: #{tpu_custom_call.1} parent=0
    _
  %s10 = ssub.s32 1, %s8
  %s11 = scalar_select 0, %s10, %s8
  $region1: #{tpu_custom_call.1} parent=0
    #allocation4 [shape = 'u8[8192]{0}', space=vmem, size = 0x2000, scoped, tag = 'output window, operand 0']
    #allocation5 [shape = 's32[2]{0}', space=sflag, size = 0x8, scoped, tag = 'scoped memory for tpu_custom_call.1']
    %12 = vsyncpa [#allocation5], 0
    %s13 = scalar_lea.sflag [#allocation5], 1
    %14 = vsyncpa %s13, 0
    loop: start=0, step=1, limit=4
    $region2: #{tpu_custom_call.1} parent=1 // loop_pre_header
      _
    $region3: #{tpu_custom_call.1} parent=1 // loop_header
      %s16 = sphi 0, %s20
      %p17 = scmp.ge.s32.totalorder %s16, 4
      %s23 = sphi 0, %s35
      %s24 = sphi 0, %s31
      %s25 = sphi 0, %s23
      %s26 = sphi 0, %s24
      %s27 = sphi 0, %s25
      %s28 = sphi 0, %s26
      %s38 = sphi 0, %s40
      %s41 = sphi 0, %s38
      %s42 = sphi 0, %s41
      %s58 = sphi 0, %s42
      %s64 = sphi 0, %s66
      %s67 = sphi 0, %s64
      %s68 = sphi 0, %s67
      %s84 = sphi 0, %s68
      %s90 = sphi 0, %s92
      %s93 = sphi 0, %s90
      %s94 = sphi 0, %s93
      %s110 = sphi 0, %s94
      %s116 = sphi 0, %s118
      %s119 = sphi 0, %s116
      %s120 = sphi 0, %s119
      %s136 = sphi 0, %s120
      %s140 = sphi 0, %s140
      %s142 = sphi 0, %s140
      %s143 = sphi 0, %s142
      %s157 = sphi 0, %s143
      %s161 = sphi 0, %s161
      %s163 = sphi 0, %s161
      %s164 = sphi 0, %s163
      %s178 = sphi 0, %s164
      %s182 = sphi 0, %s182
      %s184 = sphi 0, %s182
      %s185 = sphi 0, %s184
      %s199 = sphi 0, %s185
      %s205 = sphi 0, %s207
      %s208 = sphi 0, %s205
      %s209 = sphi 0, %s208
      %s225 = sphi 0, %s209
    $region4: #{tpu_custom_call.1} parent=1 // loop_header_branch
      %19 = sbr.rel (%p17) target = $region8
    $region5: #{tpu_custom_call.1} parent=1 // loop_body
      %s21 = ssub.s32 %s16, 1
      %s22 = ssub.s32 %s16, 2
      %s29 = sadd.s32 1, %s24
      %p30 = scmp.ge.s32.totalorder %s29, 1
      %s31 = scalar_select %p30, 0, %s29
      %s32 = sadd.s32 1, %s23
      %s33 = scalar_select %p30, %s32, %s23
      %p34 = scmp.ge.s32.totalorder %s33, 2
      %s35 = scalar_select %p34, 0, %s33
      %s36 = ssub.s32 %s23, %s35
      %p37 = scmp.eq.s32.totalorder %s36, 0
      %s39 = sadd.s32 %s38, 1
      %s40 = scalar_select %p37, %s38, %s39
      %p43 = pneg %p37
      %p44 = scmp.eq.s32.totalorder %s16, 1
      %p45 = por %p43, %p44
      %p46 = scmp.ne.s32.totalorder %s38, %s41
      %p47 = scmp.eq.s32.totalorder %s16, 0
      %p48 = por %p46, %p47
      %p49 = scmp.ne.s32.totalorder %s38, %s41
      %p50 = scmp.eq.s32.totalorder %s21, 1
      %p51 = por %p49, %p50
      %p52 = scmp.ne.s32.totalorder %s41, %s42
      %p53 = scmp.eq.s32.totalorder %s21, 0
      %p54 = por %p52, %p53
      %p55 = scmp.ne.s32.totalorder %s41, %s42
      %p56 = scmp.eq.s32.totalorder %s22, 1
      %p57 = por %p55, %p56
      %p59 = scmp.ne.s32.totalorder %s42, %s58
      %p60 = scmp.eq.s32.totalorder %s22, 0
      %p61 = por %p59, %p60
      %s62 = ssub.s32 %s24, %s31
      %p63 = scmp.eq.s32.totalorder %s62, 0
      %s65 = sadd.s32 %s64, 1
      %s66 = scalar_select %p63, %s64, %s65
      %p69 = pneg %p63
      %p70 = scmp.eq.s32.totalorder %s16, 1
      %p71 = por %p69, %p70
      %p72 = scmp.ne.s32.totalorder %s64, %s67
      %p73 = scmp.eq.s32.totalorder %s16, 0
      %p74 = por %p72, %p73
      %p75 = scmp.ne.s32.totalorder %s64, %s67
      %p76 = scmp.eq.s32.totalorder %s21, 1
      %p77 = por %p75, %p76
      %p78 = scmp.ne.s32.totalorder %s67, %s68
      %p79 = scmp.eq.s32.totalorder %s21, 0
      %p80 = por %p78, %p79
      %p81 = scmp.ne.s32.totalorder %s67, %s68
      %p82 = scmp.eq.s32.totalorder %s22, 1
      %p83 = por %p81, %p82
      %p85 = scmp.ne.s32.totalorder %s68, %s84
      %p86 = scmp.eq.s32.totalorder %s22, 0
      %p87 = por %p85, %p86
      %s88 = ssub.s32 %s24, %s31
      %p89 = scmp.eq.s32.totalorder %s88, 0
      %s91 = sadd.s32 %s90, 1
      %s92 = scalar_select %p89, %s90, %s91
      %p95 = pneg %p89
      %p96 = scmp.eq.s32.totalorder %s16, 1
      %p97 = por %p95, %p96
      %p98 = scmp.ne.s32.totalorder %s90, %s93
      %p99 = scmp.eq.s32.totalorder %s16, 0
      %p100 = por %p98, %p99
      %p101 = scmp.ne.s32.totalorder %s90, %s93
      %p102 = scmp.eq.s32.totalorder %s21, 1
      %p103 = por %p101, %p102
      %p104 = scmp.ne.s32.totalorder %s93, %s94
      %p105 = scmp.eq.s32.totalorder %s21, 0
      %p106 = por %p104, %p105
      %p107 = scmp.ne.s32.totalorder %s93, %s94
      %p108 = scmp.eq.s32.totalorder %s22, 1
      %p109 = por %p107, %p108
      %p111 = scmp.ne.s32.totalorder %s94, %s110
      %p112 = scmp.eq.s32.totalorder %s22, 0
      %p113 = por %p111, %p112
      %s114 = ssub.s32 %s24, %s31
      %p115 = scmp.eq.s32.totalorder %s114, 0
      %s117 = sadd.s32 %s116, 1
      %s118 = scalar_select %p115, %s116, %s117
      %p121 = pneg %p115
      %p122 = scmp.eq.s32.totalorder %s16, 1
      %p123 = por %p121, %p122
      %p124 = scmp.ne.s32.totalorder %s116, %s119
      %p125 = scmp.eq.s32.totalorder %s16, 0
      %p126 = por %p124, %p125
      %p127 = scmp.ne.s32.totalorder %s116, %s119
      %p128 = scmp.eq.s32.totalorder %s21, 1
      %p129 = por %p127, %p128
      %p130 = scmp.ne.s32.totalorder %s119, %s120
      %p131 = scmp.eq.s32.totalorder %s21, 0
      %p132 = por %p130, %p131
      %p133 = scmp.ne.s32.totalorder %s119, %s120
      %p134 = scmp.eq.s32.totalorder %s22, 1
      %p135 = por %p133, %p134
      %p137 = scmp.ne.s32.totalorder %s120, %s136
      %p138 = scmp.eq.s32.totalorder %s22, 0
      %p139 = por %p137, %p138
      %s141 = sadd.s32 %s140, 1
      %p144 = scmp.eq.s32.totalorder %s16, 1
      %p145 = scmp.ne.s32.totalorder %s140, %s142
      %p146 = scmp.eq.s32.totalorder %s16, 0
      %p147 = por %p145, %p146
      %p148 = scmp.ne.s32.totalorder %s140, %s142
      %p149 = scmp.eq.s32.totalorder %s21, 1
      %p150 = por %p148, %p149
      %p151 = scmp.ne.s32.totalorder %s142, %s143
      %p152 = scmp.eq.s32.totalorder %s21, 0
      %p153 = por %p151, %p152
      %p154 = scmp.ne.s32.totalorder %s142, %s143
      %p155 = scmp.eq.s32.totalorder %s22, 1
      %p156 = por %p154, %p155
      %p158 = scmp.ne.s32.totalorder %s143, %s157
      %p159 = scmp.eq.s32.totalorder %s22, 0
      %p160 = por %p158, %p159
      %s162 = sadd.s32 %s161, 1
      %p165 = scmp.eq.s32.totalorder %s16, 1
      %p166 = scmp.ne.s32.totalorder %s161, %s163
      %p167 = scmp.eq.s32.totalorder %s16, 0
      %p168 = por %p166, %p167
      %p169 = scmp.ne.s32.totalorder %s161, %s163
      %p170 = scmp.eq.s32.totalorder %s21, 1
      %p171 = por %p169, %p170
      %p172 = scmp.ne.s32.totalorder %s163, %s164
      %p173 = scmp.eq.s32.totalorder %s21, 0
      %p174 = por %p172, %p173
      %p175 = scmp.ne.s32.totalorder %s163, %s164
      %p176 = scmp.eq.s32.totalorder %s22, 1
      %p177 = por %p175, %p176
      %p179 = scmp.ne.s32.totalorder %s164, %s178
      %p180 = scmp.eq.s32.totalorder %s22, 0
      %p181 = por %p179, %p180
      %s183 = sadd.s32 %s182, 1
      %p186 = scmp.eq.s32.totalorder %s16, 1
      %p187 = scmp.ne.s32.totalorder %s182, %s184
      %p188 = scmp.eq.s32.totalorder %s16, 0
      %p189 = por %p187, %p188
      %p190 = scmp.ne.s32.totalorder %s182, %s184
      %p191 = scmp.eq.s32.totalorder %s21, 1
      %p192 = por %p190, %p191
      %p193 = scmp.ne.s32.totalorder %s184, %s185
      %p194 = scmp.eq.s32.totalorder %s21, 0
      %p195 = por %p193, %p194
      %p196 = scmp.ne.s32.totalorder %s184, %s185
      %p197 = scmp.eq.s32.totalorder %s22, 1
      %p198 = por %p196, %p197
      %p200 = scmp.ne.s32.totalorder %s185, %s199
      %p201 = scmp.eq.s32.totalorder %s22, 0
      %p202 = por %p200, %p201
      %s203 = ssub.s32 %s23, %s35
      %p204 = scmp.eq.s32.totalorder %s203, 0
      %s206 = sadd.s32 %s205, 1
      %s207 = scalar_select %p204, %s205, %s206
      %p210 = pneg %p204
      %p211 = scmp.eq.s32.totalorder %s16, 1
      %p212 = por %p210, %p211
      %p213 = scmp.ne.s32.totalorder %s205, %s208
      %p214 = scmp.eq.s32.totalorder %s16, 0
      %p215 = por %p213, %p214
      %p216 = scmp.ne.s32.totalorder %s205, %s208
      %p217 = scmp.eq.s32.totalorder %s21, 1
      %p218 = por %p216, %p217
      %p219 = scmp.ne.s32.totalorder %s208, %s209
      %p220 = scmp.eq.s32.totalorder %s21, 0
      %p221 = por %p219, %p220
      %p222 = scmp.ne.s32.totalorder %s208, %s209
      %p223 = scmp.eq.s32.totalorder %s22, 1
      %p224 = por %p222, %p223
      %p226 = scmp.ne.s32.totalorder %s209, %s225
      %p227 = scmp.eq.s32.totalorder %s22, 0
      %p228 = por %p226, %p227
      %p229 = scmp.le.s32.totalorder 1, %s16
      %p230 = scmp.lt.s32.totalorder %s16, 3
      %p231 = pnand %p229, %p230
      %p232 = pneg %p231
      // Predicated region
      $region9: #{tpu_custom_call.1} parent=5 // pred_check
        _
      $region10: #{tpu_custom_call.1} parent=5 // pred_check_branch
        %234 = sbr.rel (%p231) target = $region12
      $region11: #{tpu_custom_call.1} parent=5 // pred_region
        %s235 = ssub.s32 %s16, 1
        // Predicated region
        $region13: #{tpu_custom_call.1} parent=11 // pred_check
          %p236 = pneg %p80
        $region14: #{tpu_custom_call.1} parent=11 // pred_check_branch
          %238 = sbr.rel (%p236) target = $region16
        $region15: #{tpu_custom_call.1} parent=11 // pred_region
          %p239 = scmp.lt.s32.totalorder %s26, 0
          %s240 = scalar_select %p239, %s26, 0
          %s241 = smul.addr %s240, 4
          %s242 = scalar_lea.vmem %s1, %s241
        $region16: #{tpu_custom_call.1} parent=11 // pred_fallthru
          _
        // Predicated region
        $region17: #{tpu_custom_call.1} parent=11 // pred_check
          %p243 = pneg %p106
        $region18: #{tpu_custom_call.1} parent=11 // pred_check_branch
          %245 = sbr.rel (%p243) target = $region20
        $region19: #{tpu_custom_call.1} parent=11 // pred_region
          %p246 = scmp.lt.s32.totalorder %s26, 0
          %s247 = scalar_select %p246, %s26, 0
          %s248 = scalar_lea.vmem %s2, %s247
        $region20: #{tpu_custom_call.1} parent=11 // pred_fallthru
          _
        // Predicated region
        $region21: #{tpu_custom_call.1} parent=11 // pred_check
          %p249 = pneg %p132
        $region22: #{tpu_custom_call.1} parent=11 // pred_check_branch
          %251 = sbr.rel (%p249) target = $region24
        $region23: #{tpu_custom_call.1} parent=11 // pred_region
          %s252 = smul.u32 8, %s26
          %p253 = scmp.lt.s32.totalorder %s252, 7
          %s254 = scalar_select %p253, %s252, 7
          %s255 = smul.addr %s254, 4
          %s256 = scalar_lea.vmem %s3, %s255
          %s257 = smul.u32 8, %s26
        $region24: #{tpu_custom_call.1} parent=11 // pred_fallthru
          _
        // Predicated region
        $region25: #{tpu_custom_call.1} parent=11 // pred_check
          %p258 = pneg %p153
        $region26: #{tpu_custom_call.1} parent=11 // pred_check_branch
          %260 = sbr.rel (%p258) target = $region28
        $region27: #{tpu_custom_call.1} parent=11 // pred_region
          _
        $region28: #{tpu_custom_call.1} parent=11 // pred_fallthru
          _
        // Predicated region
        $region29: #{tpu_custom_call.1} parent=11 // pred_check
          %p261 = pneg %p174
        $region30: #{tpu_custom_call.1} parent=11 // pred_check_branch
          %263 = sbr.rel (%p261) target = $region32
        $region31: #{tpu_custom_call.1} parent=11 // pred_region
          _
        $region32: #{tpu_custom_call.1} parent=11 // pred_fallthru
          _
        // Predicated region
        $region33: #{tpu_custom_call.1} parent=11 // pred_check
          %p264 = pneg %p195
        $region34: #{tpu_custom_call.1} parent=11 // pred_check_branch
          %266 = sbr.rel (%p264) target = $region36
        $region35: #{tpu_custom_call.1} parent=11 // pred_region
          _
        $region36: #{tpu_custom_call.1} parent=11 // pred_fallthru
          _
      $region12: #{tpu_custom_call.1} parent=5 // pred_fallthru
        _
      %p267 = scmp.lt.s32.totalorder %s16, 2
      // Predicated region
      $region37: #{tpu_custom_call.1} parent=5 // pred_check
        %p268 = pneg %p267
      $region38: #{tpu_custom_call.1} parent=5 // pred_check_branch
        %270 = sbr.rel (%p268) target = $region40
      $region39: #{tpu_custom_call.1} parent=5 // pred_region
        // Predicated region
        $region41: #{tpu_custom_call.1} parent=39 // pred_check
          %p271 = pneg %p48
        $region42: #{tpu_custom_call.1} parent=39 // pred_check_branch
          %273 = sbr.rel (%p271) target = $region44
        $region43: #{tpu_custom_call.1} parent=39 // pred_region
          %p274 = scmp.lt.s32.totalorder %s23, 1
          %s275 = scalar_select %p274, %s23, 1
          %s276 = smul.addr %s275, 8
          %s277 = scalar_lea.vmem %s0, %s276
        $region44: #{tpu_custom_call.1} parent=39 // pred_fallthru
          _
      $region40: #{tpu_custom_call.1} parent=5 // pred_fallthru
        _
      %p278 = scmp.le.s32.totalorder 1, %s16
      %p279 = scmp.lt.s32.totalorder %s16, 3
      %p280 = pnand %p278, %p279
      %p281 = pneg %p280
      // Predicated region
      $region45: #{tpu_custom_call.1} parent=5 // pred_check
        _
      $region46: #{tpu_custom_call.1} parent=5 // pred_check_branch
        %283 = sbr.rel (%p280) target = $region48
      $region47: #{tpu_custom_call.1} parent=5 // pred_region
        %s284 = ssub.s32 %s16, 1
        %p285 = scmp.lt.s32.totalorder %s25, 1
        %s286 = scalar_select %p285, %s25, 1
        %s287 = smul.addr %s286, 8
        %s288 = scalar_lea.vmem %s0, %s287
        %p289 = pneg %p54
        %p290 = pneg %p51
        %p291 = scmp.lt.s32.totalorder %s26, 0
        %s292 = scalar_select %p291, %s26, 0
        %s293 = smul.addr %s292, 4
        %s294 = scalar_lea.vmem %s1, %s293
        %p295 = pneg %p80
        %p296 = pneg %p77
        %p297 = scmp.lt.s32.totalorder %s26, 0
        %s298 = scalar_select %p297, %s26, 0
        %s299 = scalar_lea.vmem %s2, %s298
        %p300 = pneg %p106
        %p301 = pneg %p103
        %s302 = smul.u32 8, %s26
        %p303 = scmp.lt.s32.totalorder %s302, 7
        %s304 = scalar_select %p303, %s302, 7
        %s305 = smul.addr %s304, 4
        %s306 = scalar_lea.vmem %s3, %s305
        %p307 = pneg %p132
        %p308 = pneg %p129
        %p309 = pneg %p153
        %p310 = pneg %p150
        %p311 = pneg %p174
        %p312 = pneg %p171
        %p313 = pneg %p195
        %p314 = pneg %p192
        %p315 = pneg %p221
        %p316 = pneg %p218
        %s317 = sand.u32 %s208, 1
        %s318 = scalar_lea.sflag [#allocation5], %s317
        %s319 = sand.u32 %s208, 1
        %s320 = smul.addr %s319, 8
        %s321 = scalar_lea.vmem [#allocation4], %s320
        %p322 = scmp.lt.s32.totalorder %s25, 1
        %s323 = scalar_select %p322, %s25, 1
        %s324 = smul.addr %s323, 8
        %s325 = scalar_lea.vmem %s0, %s324
        %p326 = scmp.lt.s32.totalorder %s26, 0
        %s327 = scalar_select %p326, %s26, 0
        %s328 = smul.addr %s327, 4
        %s329 = scalar_lea.vmem %s1, %s328
        %p330 = scmp.lt.s32.totalorder %s26, 0
        %s331 = scalar_select %p330, %s26, 0
        %s332 = scalar_lea.vmem %s2, %s331
        %s333 = smul.u32 8, %s26
        %p334 = scmp.lt.s32.totalorder %s333, 7
        %s335 = scalar_select %p334, %s333, 7
        %s336 = smul.addr %s335, 4
        %s337 = scalar_lea.vmem %s3, %s336
        %s338 = smul.u32 8, %s26
        %p340 = scmp.eq.s32.totalorder %s26, 0
        // Predicated region
        $region49: #{tpu_custom_call.1} parent=47 // pred_check
          %p341 = pneg %p340
        $region50: #{tpu_custom_call.1} parent=47 // pred_check_branch
          %343 = sbr.rel (%p341) target = $region52
        $region51: #{tpu_custom_call.1} parent=47 // pred_region
          %v344 = vld [vmem:[%s325] sm:$0xff]
          %v345 = vpack.c.bf16 %v344, %v344
          %vm346 = vcmask 257024
          %347 = vst.msk [vmem:[#allocation3] sm:$0xf] %vm346, %v345
          %v348 = vld [vmem:[%s325] sm:$0xff]
          %v349 = vld [vmem:[%s4] sm:$0x1]
          %v351 = vlaneseq
          %v352 = vshrl.u32 %v351, 7
          %v353 = vsub.s32 0, %v352
          %v354 = vrot.slane %v349, %v353
          %v356 = vadd.f32 %v348, %v354
          %vm357 = vcmask 261120
          %358 = vst.msk [vmem:[#allocation2] sm:$0xff] %vm357, %v356
        $region52: #{tpu_custom_call.1} parent=47 // pred_fallthru
          _
        %v359 = vld [vmem:[#allocation3] sm:$0xf]
        %v360 = vld [vmem:[%s329] sm:$0xf]
        %v361 = vld [vmem:[%s329 + $0x4] sm:$0xf]
        %v362 = vld [vmem:[%s329 + $0x8] sm:$0xf]
        %v363 = vld [vmem:[%s329 + $0xc] sm:$0xf]
        %v364 = vld [vmem:[%s332] sm:$0x1]
        %v366 = vlaneseq
        %v367 = vshrl.u32 %v366, 7
        %v368 = vsub.s32 0, %v367
        %v369 = vrot.slane %v364, %v368
        %v375 = vunpack.c.l.b16 %v360
        %v376 = vunpack.c.l.b16 %v361
        %v377 = vunpack.c.l.b16 %v362
        %v378 = vunpack.c.l.b16 %v363
        %v379 = vpack.c.b16 %v376, %v375
        %v380 = vpack.c.b16 %v378, %v377
        %vm383 = vcmask 261120
        %v385 = vsel %vm383, %v359, 0
        %387 = vmatprep.subr.bf16.mxu0 0
        %388 = vmatpush1.bf16.msra.mxu0 %v379
        %389 = vmatprep.subr.bf16.mxu0 0
        %390 = vmatpush1.bf16.msra.mxu0 %v380
        %391 = vmatprep.subr.bf16.mxu0 0
        %392 = vmatpush1.bf16.msra.mxu0 0
        %393 = vmatprep.subr.bf16.mxu0 0
        %394 = vmatpush1.bf16.msra.mxu0 0
        %395 = vmatprep.subr.bf16.mxu0 0
        %396 = vmatpush1.bf16.msra.mxu0 0
        %397 = vmatprep.subr.bf16.mxu0 0
        %398 = vmatpush1.bf16.msra.mxu0 0
        %399 = vmatprep.subr.bf16.mxu0 0
        %400 = vmatpush1.bf16.msra.mxu0 0
        %401 = vmatprep.subr.bf16.mxu0 0
        %402 = vmatpush1.bf16.msra.mxu0 0
        %403 = vmatprep.subr.bf16.mxu0 0
        %404 = vmatpush1.bf16.msra.mxu0 0
        %405 = vmatprep.subr.bf16.mxu0 0
        %406 = vmatpush1.bf16.msra.mxu0 0
        %407 = vmatprep.subr.bf16.mxu0 0
        %408 = vmatpush1.bf16.msra.mxu0 0
        %409 = vmatprep.subr.bf16.mxu0 0
        %410 = vmatpush1.bf16.msra.mxu0 0
        %411 = vmatprep.subr.bf16.mxu0 0
        %412 = vmatpush1.bf16.msra.mxu0 0
        %413 = vmatprep.subr.bf16.mxu0 0
        %414 = vmatpush1.bf16.msra.mxu0 0
        %415 = vmatprep.subr.bf16.mxu0 0
        %416 = vmatpush1.bf16.msra.mxu0 0
        %417 = vmatprep.subr.bf16.mxu0 0
        %418 = vmatpush1.bf16.msra.mxu0 0
        %419 = vmatprep.mubr.bf16.mxu0 0
        %420 = vmatmul.mubr.bf16.gmra.mrb[0].mxu0 %v385
        %v421 = vpop.f32.mrb[0].mxu0
        %v422 = vadd.f32 %v369, %v421
        %v423 = vpop.f32.mrb[0].mxu0
        %v424 = vpop.f32.mrb[0].mxu0
        %v425 = vpop.f32.mrb[0].mxu0
        %426 = vdwg.mxu0
        %v427 = vmax.f32 %v422, 0.0
        %v428 = vld [vmem:[#allocation2] sm:$0xff]
        %v429 = vpack.c.bf16 %v427, %v427
        %v430 = vld [vmem:[%s337] sm:$0xf]
        %v431 = vld [vmem:[%s337 + $0x4] sm:$0xf]
        %v432 = vld [vmem:[%s337 + $0x8] sm:$0xf]
        %v433 = vld [vmem:[%s337 + $0xc] sm:$0xf]
        %v434 = vld [vmem:[%s337 + $0x10] sm:$0xf]
        %v435 = vld [vmem:[%s337 + $0x14] sm:$0xf]
        %v436 = vld [vmem:[%s337 + $0x18] sm:$0xf]
        %v437 = vld [vmem:[%s337 + $0x1c] sm:$0xf]
        %v446 = vunpack.c.l.b16 %v430
        %v447 = vunpack.c.l.b16 %v431
        %v448 = vunpack.c.l.b16 %v432
        %v449 = vunpack.c.l.b16 %v433
        %v450 = vunpack.c.l.b16 %v434
        %v451 = vunpack.c.l.b16 %v435
        %v452 = vunpack.c.l.b16 %v436
        %v453 = vunpack.c.l.b16 %v437
        %v454 = vpack.c.b16 %v447, %v446
        %v455 = vpack.c.b16 %v449, %v448
        %v456 = vpack.c.b16 %v451, %v450
        %v457 = vpack.c.b16 %v453, %v452
        %vm462 = vcmask 523264
        %v464 = vsel %vm462, %v429, 0
        %466 = vmatprep.subr.bf16.mxu0 0
        %467 = vmatpush1.bf16.msra.mxu0 %v454
        %468 = vmatprep.subr.bf16.mxu0 0
        %469 = vmatpush1.bf16.msra.mxu0 %v455
        %470 = vmatprep.subr.bf16.mxu0 0
        %471 = vmatpush1.bf16.msra.mxu0 %v456
        %472 = vmatprep.subr.bf16.mxu0 0
        %473 = vmatpush1.bf16.msra.mxu0 %v457
        %474 = vmatprep.subr.bf16.mxu0 0
        %475 = vmatpush1.bf16.msra.mxu0 0
        %476 = vmatprep.subr.bf16.mxu0 0
        %477 = vmatpush1.bf16.msra.mxu0 0
        %478 = vmatprep.subr.bf16.mxu0 0
        %479 = vmatpush1.bf16.msra.mxu0 0
        %480 = vmatprep.subr.bf16.mxu0 0
        %481 = vmatpush1.bf16.msra.mxu0 0
        %482 = vmatprep.subr.bf16.mxu0 0
        %483 = vmatpush1.bf16.msra.mxu0 0
        %484 = vmatprep.subr.bf16.mxu0 0
        %485 = vmatpush1.bf16.msra.mxu0 0
        %486 = vmatprep.subr.bf16.mxu0 0
        %487 = vmatpush1.bf16.msra.mxu0 0
        %488 = vmatprep.subr.bf16.mxu0 0
        %489 = vmatpush1.bf16.msra.mxu0 0
        %490 = vmatprep.subr.bf16.mxu0 0
        %491 = vmatpush1.bf16.msra.mxu0 0
        %492 = vmatprep.subr.bf16.mxu0 0
        %493 = vmatpush1.bf16.msra.mxu0 0
        %494 = vmatprep.subr.bf16.mxu0 0
        %495 = vmatpush1.bf16.msra.mxu0 0
        %496 = vmatprep.subr.bf16.mxu0 0
        %497 = vmatpush1.bf16.msra.mxu0 0
        %498 = vmatprep.mubr.bf16.mxu0 0
        %499 = vmatmul.mubr.bf16.gmra.mrb[0].mxu0 %v464
        %v500 = vpop.f32.mrb[0].mxu0
        %v501 = vadd.f32 0.0, %v500
        %v502 = vpop.f32.mrb[0].mxu0
        %v503 = vpop.f32.mrb[0].mxu0
        %v504 = vpop.f32.mrb[0].mxu0
        %505 = vdwg.mxu0
        %v506 = vadd.f32 %v428, %v501
        %507 = vst.msk [vmem:[#allocation2] sm:$0xff] %vm383, %v506
        // Predicated region
        $region53: #{tpu_custom_call.1} parent=47 // pred_check
          %p508 = pneg %p340
        $region54: #{tpu_custom_call.1} parent=47 // pred_check_branch
          %510 = sbr.rel (%p508) target = $region56
        $region55: #{tpu_custom_call.1} parent=47 // pred_region
          %v511 = vld [vmem:[#allocation2] sm:$0xff]
          %v512 = vsel %vm383, %v511, 0.0
          %513 = vadd.xlane.f32.xlu0 %v512
          %v514 = vpop.xlane.xlu0 %513
          %v515 = vrcp.pop 32.0
          %v516 = vmul.f32 %v514, %v515
          %v517 = vsub.f32 %v511, %v516
          %v518 = vmul.f32 %v517, %v517
          %v519 = vsel %vm383, %v518, 0.0
          %520 = vadd.xlane.f32.xlu0 %v519
          %v521 = vpop.xlane.xlu0 %520
          %v522 = vmul.f32 %v521, 0.032258064
          %v523 = vrsqrt.pop %v522
          %v524 = vmul.f32 %v522, %v523
          %vm525 = vcmp.eq.f32.partialorder %v522, inf
          %v526 = vsel %vm525, %v522, %v524
          %vm527 = vcmp.eq.f32.partialorder %v522, 0.0
          %v528 = vand.u32 %v522, 2147483648
          %v529 = vsel %vm527, %v528, %v526
          %v530 = vadd.f32 %v529, 1e-06
          %v531 = vrcp.pop %v530
          %v532 = vmul.f32 1.0, %v531
          %v533 = vmul.f32 %v517, %v532
          %v534 = vld [vmem:[%s5] sm:$0x1]
          %v536 = vlaneseq
          %v537 = vshrl.u32 %v536, 7
          %v538 = vsub.s32 0, %v537
          %v539 = vrot.slane %v534, %v538
          %v541 = vmul.f32 %v539, %v533
          %v542 = vld [vmem:[%s6] sm:$0x1]
          %v544 = vlaneseq
          %v545 = vshrl.u32 %v544, 7
          %v546 = vsub.s32 0, %v545
          %v547 = vrot.slane %v542, %v546
          %v549 = vadd.f32 %v541, %v547
          %550 = vst.msk [vmem:[%s321] sm:$0xff] %vm383, %v549
        $region56: #{tpu_custom_call.1} parent=47 // pred_fallthru
          _
        %s551 = sand.u32 %s208, 1
        %s552 = scalar_lea.sflag [#allocation5], %s551
        %s553 = sand.u32 %s208, 1
        %s554 = smul.addr %s553, 8
        %s555 = scalar_lea.vmem [#allocation4], %s554
        // Predicated region
        $region57: #{tpu_custom_call.1} parent=47 // pred_check
          %p556 = pneg %p218
        $region58: #{tpu_custom_call.1} parent=47 // pred_check_branch
          %558 = sbr.rel (%p556) target = $region60
        $region59: #{tpu_custom_call.1} parent=47 // pred_region
          %s560 = ssub.s32 128, 128
          %561 = vsyncadd %s552, %s560
          %s562 = smul.addr %s25, 128
          %s563 = scalar_lea.hbm %s7, %s562
          %s565 = sshll.u32 %s555, 4
          %s566 = int_to_ptr.vmem [resolvable:$true] %s565
          %568 = dma.vmem_to_hbm [thread:$0]  %s566, 128, %s563, %s552
        $region60: #{tpu_custom_call.1} parent=47 // pred_fallthru
          _
      $region48: #{tpu_custom_call.1} parent=5 // pred_fallthru
        _
      %p569 = scmp.le.s32.totalorder 2, %s16
      // Predicated region
      $region61: #{tpu_custom_call.1} parent=5 // pred_check
        %p570 = pneg %p569
      $region62: #{tpu_custom_call.1} parent=5 // pred_check_branch
        %572 = sbr.rel (%p570) target = $region64
      $region63: #{tpu_custom_call.1} parent=5 // pred_region
        %s573 = ssub.s32 %s16, 2
        // Predicated region
        $region65: #{tpu_custom_call.1} parent=63 // pred_check
          %p574 = pneg %p224
        $region66: #{tpu_custom_call.1} parent=63 // pred_check_branch
          %576 = sbr.rel (%p574) target = $region68
        $region67: #{tpu_custom_call.1} parent=63 // pred_region
          %s577 = sand.u32 %s209, 1
          %s578 = scalar_lea.sflag [#allocation5], %s577
          %s579 = sand.u32 %s209, 1
          %s580 = smul.addr %s579, 8
          %s581 = scalar_lea.vmem [#allocation4], %s580
          %582 = dma.done %s578, 128
        $region68: #{tpu_custom_call.1} parent=63 // pred_fallthru
          _
      $region64: #{tpu_custom_call.1} parent=5 // pred_fallthru
        _
    $region6: #{tpu_custom_call.1} parent=1 // loop_footer
      %s20 = sadd.s32 1, %s16
    $region7: #{tpu_custom_call.1} parent=1 // loop_footer_branch
      %15 = sbr.rel target = $region3
    $region8: #{tpu_custom_call.1} parent=1 // loop_exit
      _
    %583 = vsyncpa [#allocation5], 1
    %s584 = scalar_lea.sflag [#allocation5], 1
    %585 = vsyncpa %s584, 1

</llo_original>
